<compile_context>
chip_gen: v7x
topology: tpu7x:2x2x1
jax: 0.10.0
libtpu: 0.0.40
codegen_flags: <defaults>
</compile_context>

<pallas_src>
import jax
import jax.numpy as jnp
from jax.experimental import pallas as pl
from jax.experimental.pallas import tpu as pltpu

LN_EPS = 1e-12         # BERT LayerNorm eps
MASK_VALUE = -10000.0  # HF BERT additive attention-mask value
NORM_EPS = 1e-12       # torch.nn.functional.normalize eps
_SQRT_HALF = 0.7071067811865476


# ------------------------------ small math helpers ------------------------------ #

def _ln(x, g, b):
    m = jnp.mean(x, axis=-1, keepdims=True)
    v = jnp.mean((x - m) ** 2, axis=-1, keepdims=True)
    return (x - m) * jax.lax.rsqrt(v + LN_EPS) * g + b


def _erf_poly(x):
    # Abramowitz & Stegun 7.1.26 (|err| <= 1.5e-7).  Implements exact-erf GELU semantics
    # inside the kernel using only exp + VALU ops (no dependence on an erf lowering).
    a1, a2, a3, a4, a5 = (0.254829592, -0.284496736, 1.421413741,
                          -1.453152027, 1.061405429)
    p = 0.3275911
    ax = jnp.abs(x)
    t = 1.0 / (1.0 + p * ax)
    poly = ((((a5 * t + a4) * t + a3) * t + a2) * t + a1) * t
    y = 1.0 - poly * jnp.exp(-ax * ax)
    return jnp.where(x < 0.0, -y, y)


def _gelu(x):
    # erf-based ("exact") GELU, matching HF/PyTorch BERT.
    return 0.5 * x * (1.0 + _erf_poly(x * _SQRT_HALF))


# ----------------------- Buffered(1) capability probe --------------------------- #

_SINGLE_BUFFER_OK = None


def _probe_single_buffering():
    """True if pl.Buffered(1) (single-buffered constant weight blocks) lowers here."""
    if not hasattr(pl, "Buffered"):
        return False

    def _copy(x_ref, o_ref):
        o_ref[...] = x_ref[...]

    try:
        x = jnp.zeros((8, 128), jnp.float32)
        out = pl.pallas_call(
            _copy,
            out_shape=jax.ShapeDtypeStruct((16, 128), jnp.float32),
            grid=(2,),
            in_specs=[pl.BlockSpec((8, 128), lambda i: (0, 0),
                                   pipeline_mode=pl.Buffered(1))],
            out_specs=pl.BlockSpec((8, 128), lambda i: (i, 0)),
        )(x)
        jax.block_until_ready(out)
        return True
    except Exception:
        return False


def _single_buffer_ok():
    global _SINGLE_BUFFER_OK
    if _SINGLE_BUFFER_OK is None:
        _SINGLE_BUFFER_OK = _probe_single_buffering()
    return _SINGLE_BUFFER_OK


def _const_spec(shape):
    """Constant-index weight block: never re-fetched across the grid; single-buffered
    (one VMEM copy instead of two) when the runtime supports pl.Buffered(1)."""
    index_map = lambda *_: (0,) * len(shape)
    if _single_buffer_ok():
        return pl.BlockSpec(shape, index_map, pipeline_mode=pl.Buffered(1))
    return pl.BlockSpec(shape, index_map)


# ---------------------------- generation-aware tuning --------------------------- #

def _tuning():
    """VMEM-capacity-aware knobs (v7x: 64 MiB physical VMEM; v5e/v6e: 128 MiB)."""
    try:
        cap = int(pltpu.get_tpu_info().vmem_capacity_bytes)
    except Exception:
        cap = 64 * 1024 * 1024                      # conservative (v7x-sized) fallback
    big = cap >= 100 * 1024 * 1024
    vmem_limit = min(cap * 3 // 4, 100 * 1024 * 1024)   # ~96 MiB on v5e/v6e, 48 MiB on v7x
    ln_rows = 2048 if big else 1024                 # standalone-LN tile (HBM-BW bound)
    row_block = 512 if big else 256                 # row tile for projection / FFN kernels
    q_block = 512 if big else 256                   # q-row tile for the attention core
    return vmem_limit, ln_rows, row_block, q_block


def _row_tile(rows, want):
    # Pick the requested tile when it divides evenly, otherwise fall back to the full
    # extent (always true at the toy test shapes).
    return want if rows % want == 0 else rows


# ------------------------------- Pallas kernels ---------------------------------- #

def layernorm_kernel(x_ref, g_ref, b_ref, o_ref):
    # x block: (TM, H); g, b: (1, H)
    o_ref[...] = _ln(x_ref[...], g_ref[...], b_ref[...])


def qkv_proj_kernel(x_ref, w_ref, b_ref, o_ref):
    # Fused lane-dense QKV projection: one (TM, H) @ (H, 3H) MXU matmul, f32 accumulate.
    # The 1/sqrt(head_dim) score scale is folded into the Q columns/bias at prepack time.
    qkv = jnp.dot(x_ref[...].astype(jnp.bfloat16), w_ref[...],
                  preferred_element_type=jnp.float32) + b_ref[...]
    o_ref[...] = qkv.astype(o_ref.dtype)            # bf16 out (halves glue HBM traffic)


def attention_core_kernel(q_ref, k_ref, v_ref, mask_ref, o_ref):
    # q block: (1, NH, TQ, hd) bf16; k/v: (1, NH, S, hd) bf16; mask: (1, 1, S) f32.
    q = q_ref[0]
    k = k_ref[0]
    v = v_ref[0]
    mask = mask_ref[...]                                        # (1, 1, S) additive
    scores = jnp.einsum('nqd,nkd->nqk', q, k,
                        preferred_element_type=jnp.float32) + mask   # (NH, TQ, S) f32
    scores = scores - jnp.max(scores, axis=-1, keepdims=True)
    p = jnp.exp(scores)
    p = p * pl.reciprocal(jnp.sum(p, axis=-1, keepdims=True), approx=True)
    ctx = jnp.einsum('nqk,nkd->nqd', p.astype(v.dtype), v,
                     preferred_element_type=jnp.float32)        # (NH, TQ, hd)
    o_ref[0] = ctx.astype(o_ref.dtype)


def out_ffn_kernel(ctx_ref, x_ref, wo_ref, bo_ref, ln1g_ref, ln1b_ref,
                   w1_ref, b1_ref, w2_ref, b2_ref, ln2g_ref, ln2b_ref, o_ref):
    # ctx: (TM, H) bf16 merged heads; x: (TM, H) f32 residual.
    # Attention output projection: single full-K lane-dense (H, H) contraction (the
    # head reduction is inside the contraction; no per-head partials / cross-head reduce).
    x = x_ref[...]
    attn = jnp.dot(ctx_ref[...], wo_ref[...],
                   preferred_element_type=jnp.float32) + bo_ref[...]
    h1 = _ln(x + attn, ln1g_ref[...], ln1b_ref[...])            # post-LN (BERT)
    f = jnp.dot(h1.astype(jnp.bfloat16), w1_ref[...],
                preferred_element_type=jnp.float32) + b1_ref[...]
    f = _gelu(f)
    f = jnp.dot(f.astype(jnp.bfloat16), w2_ref[...],
                preferred_element_type=jnp.float32) + b2_ref[...]
    o_ref[...] = _ln(h1 + f, ln2g_ref[...], ln2b_ref[...])


def proj_norm_kernel(cls_ref, w_ref, b_ref, o_ref):
    # cls: (B, H) f32; w: (H, E) bf16; b: (1, E) f32 -> L2-normalized (B, E).
    y = jnp.dot(cls_ref[...].astype(jnp.bfloat16), w_ref[...],
                preferred_element_type=jnp.float32) + b_ref[...]
    norm = jnp.sqrt(jnp.sum(y * y, axis=-1, keepdims=True))
    o_ref[...] = y / jnp.maximum(norm, NORM_EPS)    # matches F.normalize(p=2, dim=1)


# --------------------------------- Wrappers --------------------------------------- #

def pallas_layernorm(x, g, b, *, block_rows):
    B, S, H = x.shape
    R = B * S
    tm = _row_tile(R, block_rows)
    x2 = x.reshape(R, H)
    out = pl.pallas_call(
        layernorm_kernel,
        out_shape=jax.ShapeDtypeStruct((R, H), x.dtype),
        grid=(pl.cdiv(R, tm),),
        in_specs=[pl.BlockSpec((tm, H), lambda i: (i, 0)),
                  _const_spec((1, H)),
                  _const_spec((1, H))],
        out_specs=pl.BlockSpec((tm, H), lambda i: (i, 0)),
        compiler_params=pltpu.CompilerParams(dimension_semantics=("parallel",)),
    )(x2, g.reshape(1, H), b.reshape(1, H))
    return out.reshape(B, S, H)


def pallas_qkv_proj(x2, wqkv, bqkv, *, block_rows, vmem_limit):
    R, H = x2.shape
    H3 = wqkv.shape[1]
    tm = _row_tile(R, block_rows)
    return pl.pallas_call(
        qkv_proj_kernel,
        out_shape=jax.ShapeDtypeStruct((R, H3), jnp.bfloat16),
        grid=(R // tm,),
        in_specs=[pl.BlockSpec((tm, H), lambda i: (i, 0)),
                  _const_spec((H, H3)),
                  _const_spec((1, H3))],
        out_specs=pl.BlockSpec((tm, H3), lambda i: (i, 0)),
        compiler_params=pltpu.CompilerParams(
            dimension_semantics=("parallel",),
            vmem_limit_bytes=vmem_limit),
    )(x2, wqkv, bqkv)


def pallas_attention_core(q, k, v, mask_add, *, q_block, vmem_limit):
    B, NH, S, hd = q.shape
    tq = _row_tile(S, q_block)
    return pl.pallas_call(
        attention_core_kernel,
        out_shape=jax.ShapeDtypeStruct((B, NH, S, hd), jnp.bfloat16),
        grid=(B, S // tq),
        in_specs=[pl.BlockSpec((1, NH, tq, hd), lambda b, t: (b, 0, t, 0)),
                  pl.BlockSpec((1, NH, S, hd), lambda b, t: (b, 0, 0, 0)),
                  pl.BlockSpec((1, NH, S, hd), lambda b, t: (b, 0, 0, 0)),
                  pl.BlockSpec((1, 1, S), lambda b, t: (b, 0, 0))],
        out_specs=pl.BlockSpec((1, NH, tq, hd), lambda b, t: (b, 0, t, 0)),
        compiler_params=pltpu.CompilerParams(
            dimension_semantics=("parallel", "parallel"),
            vmem_limit_bytes=vmem_limit),
    )(q, k, v, mask_add)


def pallas_out_ffn(ctx2, x2, lp, *, block_rows, vmem_limit):
    R, H = x2.shape
    I = lp['w1'].shape[1]
    tm = _row_tile(R, block_rows)
    return pl.pallas_call(
        out_ffn_kernel,
        out_shape=jax.ShapeDtypeStruct((R, H), x2.dtype),
        grid=(R // tm,),
        in_specs=[pl.BlockSpec((tm, H), lambda i: (i, 0)),     # merged attention ctx (bf16)
                  pl.BlockSpec((tm, H), lambda i: (i, 0)),     # residual x (f32)
                  _const_spec((H, H)), _const_spec((1, H)),    # out-proj
                  _const_spec((1, H)), _const_spec((1, H)),    # ln1
                  _const_spec((H, I)), _const_spec((1, I)),    # ffn in
                  _const_spec((I, H)), _const_spec((1, H)),    # ffn out
                  _const_spec((1, H)), _const_spec((1, H))],   # ln2
        out_specs=pl.BlockSpec((tm, H), lambda i: (i, 0)),
        compiler_params=pltpu.CompilerParams(
            dimension_semantics=("parallel",),
            vmem_limit_bytes=vmem_limit),
    )(ctx2, x2, lp['wo'], lp['bo'], lp['ln1_g'], lp['ln1_b'],
      lp['w1'], lp['b1'], lp['w2'], lp['b2'], lp['ln2_g'], lp['ln2_b'])


def pallas_proj_norm(cls, w, b):
    B, H = cls.shape
    E = w.shape[1]
    vspec = pl.BlockSpec(memory_space=pltpu.MemorySpace.VMEM)
    # Tiny op (B x E); whole arrays in VMEM.  At production shapes E=512 (lane dense).
    return pl.pallas_call(
        proj_norm_kernel,
        out_shape=jax.ShapeDtypeStruct((B, E), cls.dtype),
        in_specs=[vspec, vspec, vspec],
        out_specs=vspec,
    )(cls, w, b)


def pallas_bert_layer(x, mask_add, lp, *, num_heads, block_rows, q_block, vmem_limit):
    B, S, H = x.shape
    hd = H // num_heads
    R = B * S
    x2 = x.reshape(R, H)

    # (1) Fused, lane-dense QKV projection: one (R, H) @ (H, 3H) contraction, row-tiled.
    qkv = pallas_qkv_proj(x2, lp['wqkv'], lp['bqkv'],
                          block_rows=block_rows, vmem_limit=vmem_limit)

    # Head split is a pure layout op; done with XLA between pallas_calls so every
    # in-kernel op stays a canonical leading-batch / 2-D MXU contraction.
    def split(t):
        return t.reshape(B, S, num_heads, hd).transpose(0, 2, 1, 3)   # (B, NH, S, hd)
    q = split(qkv[:, :H])
    k = split(qkv[:, H:2 * H])
    v = split(qkv[:, 2 * H:])

    # (2) Attention core, tiled over (batch, q-row tiles); scores are only (NH, tq, S).
    ctx = pallas_attention_core(q, k, v, mask_add,
                                q_block=q_block, vmem_limit=vmem_limit)

    # Merge heads (layout, XLA) then (3) out-proj + LN1 + FFN + LN2, row-tiled; the head
    # reduction is folded into the single (H, H) output-projection contraction.
    ctx2 = ctx.transpose(0, 2, 1, 3).reshape(R, H)
    out2 = pallas_out_ffn(ctx2, x2, lp, block_rows=block_rows, vmem_limit=vmem_limit)
    return out2.reshape(B, S, H)


def text_encoder_forward(packed, input_ids, attention_mask, *, num_heads):
    B, S = input_ids.shape
    vmem_limit, ln_rows, row_block, q_block = _tuning()

    # TODO(synk): embedding lookup (dynamic gather) has no clean Pallas equivalent here;
    # left to XLA, as is the CLS-token slice below.
    emb = (packed['word_emb'][input_ids]
           + packed['pos_emb'][:S][None, :, :]
           + packed['type_emb'][0][None, None, :])
    x = pallas_layernorm(emb, packed['emb_ln_g'], packed['emb_ln_b'],
                         block_rows=ln_rows)

    mask_add = (1.0 - attention_mask.astype(jnp.float32))[:, None, :] * MASK_VALUE  # (B,1,S)
    for lp in packed['layers']:
        x = pallas_bert_layer(x, mask_add, lp, num_heads=num_heads,
                              block_rows=row_block, q_block=q_block,
                              vmem_limit=vmem_limit)

    cls = x[:, 0, :]                                  # last_hidden_state[:, 0, :]
    return pallas_proj_norm(cls, packed['proj_w'], packed['proj_b'])


# --------------------- one-time host-side parameter prepack ----------------------- #

def prepack_params(params, *, num_heads):
    """Hoisted out of the forward: fuse Wq/Wk/Wv into one bf16 (H, 3H) matrix (with the
    1/sqrt(hd) score scale folded into the Q part), cast matmul weights to bf16 once."""
    H = params['word_emb'].shape[1]
    assert H % num_heads == 0
    hd = H // num_heads
    scale = 1.0 / (hd ** 0.5)
    bf16 = jnp.bfloat16
    packed = {
        'word_emb': params['word_emb'],
        'pos_emb': params['pos_emb'],
        'type_emb': params['type_emb'],
        'emb_ln_g': params['emb_ln_g'],
        'emb_ln_b': params['emb_ln_b'],
        'proj_w': params['proj_w'].astype(bf16),
        'proj_b': params['proj_b'].reshape(1, -1),
        'layers': [],
    }
    for lp in params['layers']:
        I = lp['w1'].shape[1]
        packed['layers'].append({
            'wqkv': jnp.concatenate([lp['wq'] * scale, lp['wk'], lp['wv']],
                                    axis=1).astype(bf16),                  # (H, 3H)
            'bqkv': jnp.concatenate([lp['bq'] * scale, lp['bk'], lp['bv']]
                                    ).reshape(1, 3 * H),
            'wo': lp['wo'].astype(bf16), 'bo': lp['bo'].reshape(1, H),
            'ln1_g': lp['ln1_g'].reshape(1, H), 'ln1_b': lp['ln1_b'].reshape(1, H),
            'w1': lp['w1'].astype(bf16), 'b1': lp['b1'].reshape(1, I),
            'w2': lp['w2'].astype(bf16), 'b2': lp['b2'].reshape(1, H),
            'ln2_g': lp['ln2_g'].reshape(1, H), 'ln2_b': lp['ln2_b'].reshape(1, H),
        })
    return packed


# ----------------------------- Pure-JAX reference ---------------------------------- #

def ref_forward(params, input_ids, attention_mask, *, num_heads):
    B, S = input_ids.shape
    x = (params['word_emb'][input_ids]
         + params['pos_emb'][:S][None, :, :]
         + params['type_emb'][0][None, None, :])
    x = _ln(x, params['emb_ln_g'], params['emb_ln_b'])
    mask_add = (1.0 - attention_mask.astype(jnp.float32))[:, None, None, :] * MASK_VALUE
    gelu_exact = lambda t: 0.5 * t * (1.0 + jax.lax.erf(t * _SQRT_HALF))
    for lp in params['layers']:
        H = x.shape[-1]
        hd = H // num_heads
        q = x @ lp['wq'] + lp['bq']
        k = x @ lp['wk'] + lp['bk']
        v = x @ lp['wv'] + lp['bv']
        split = lambda t: t.reshape(B, S, num_heads, hd).transpose(0, 2, 1, 3)
        sc = jnp.einsum('bhqd,bhkd->bhqk', split(q), split(k)) / jnp.sqrt(hd) + mask_add
        p = jax.nn.softmax(sc, axis=-1)
        ctx = jnp.einsum('bhqk,bhkd->bhqd', p, split(v)).transpose(0, 2, 1, 3).reshape(B, S, H)
        attn_out = ctx @ lp['wo'] + lp['bo']
        h1 = _ln(x + attn_out, lp['ln1_g'], lp['ln1_b'])
        ffn = gelu_exact(h1 @ lp['w1'] + lp['b1']) @ lp['w2'] + lp['b2']
        x = _ln(h1 + ffn, lp['ln2_g'], lp['ln2_b'])
    cls = x[:, 0, :]
    y = cls @ params['proj_w'] + params['proj_b']
    n = jnp.sqrt(jnp.sum(y * y, axis=1, keepdims=True))
    return y / jnp.maximum(n, NORM_EPS)


# --------------------------------- Param init --------------------------------------- #

def init_params(key, *, vocab, max_pos, H, I, E, num_layers):
    std = 0.02
    keys = iter(jax.random.split(key, 8 + 8 * num_layers))
    nrm = lambda shape: std * jax.random.normal(next(keys), shape, jnp.float32)
    params = {
        'word_emb': nrm((vocab, H)),
        'pos_emb': nrm((max_pos, H)),
        'type_emb': nrm((2, H)),
        'emb_ln_g': jnp.ones((H,), jnp.float32),
        'emb_ln_b': jnp.zeros((H,), jnp.float32),
        'proj_w': nrm((H, E)),
        'proj_b': jnp.zeros((E,), jnp.float32),
        'layers': [],
    }
    for _ in range(num_layers):
        params['layers'].append({
            'wq': nrm((H, H)), 'bq': jnp.zeros((H,), jnp.float32),
            'wk': nrm((H, H)), 'bk': jnp.zeros((H,), jnp.float32),
            'wv': nrm((H, H)), 'bv': jnp.zeros((H,), jnp.float32),
            'wo': nrm((H, H)), 'bo': jnp.zeros((H,), jnp.float32),
            'ln1_g': jnp.ones((H,), jnp.float32), 'ln1_b': jnp.zeros((H,), jnp.float32),
            'w1': nrm((H, I)), 'b1': jnp.zeros((I,), jnp.float32),
            'w2': nrm((I, H)), 'b2': jnp.zeros((H,), jnp.float32),
            'ln2_g': jnp.ones((H,), jnp.float32), 'ln2_b': jnp.zeros((H,), jnp.float32),
        })
    return params


if __name__ == "__main__":
    B, S = 2, 8                 # batch, sequence length
    H, NH, I = 32, 4, 64        # hidden, heads, FFN intermediate (scaled-down BERT)
    E = 64                      # projection embed_dim (scaled-down from 512)
    L = 2                       # number of transformer layers
    VOCAB, MAX_POS = 50, 16

    key = jax.random.PRNGKey(0)
    k_p, k_ids = jax.random.split(key)
    params = init_params(k_p, vocab=VOCAB, max_pos=MAX_POS, H=H, I=I, E=E, num_layers=L)
    packed = prepack_params(params, num_heads=NH)   # one-time host-side repack

    input_ids = jax.random.randint(k_ids, (B, S), 0, VOCAB, dtype=jnp.int32)
    attention_mask = jnp.ones((B, S), jnp.float32).at[1, 6:].set(0.0)  # pad tail of sample 1

    out = text_encoder_forward(packed, input_ids, attention_mask, num_heads=NH)
    out = jax.block_until_ready(out)

    ref = ref_forward(params, input_ids, attention_mask, num_heads=NH)
    assert out.shape == (B, E)
    # Unit L2 norm (normalization done in f32 inside the kernel).
    assert jnp.allclose(jnp.sum(out * out, axis=1), 1.0, atol=1e-4)
    # Kernel uses bf16 matmul operands (f32 accumulation); reference is pure f32.
    assert jnp.allclose(out, ref, atol=2e-2, rtol=2e-2)

    print("KERNEL_OK")
</pallas_src>

<mosaic_0001>
module attributes {stable_mosaic.version = 11 : i64} {
  func.func @_copy(%arg0: i32, %arg1: memref<8x128xf32, #tpu.memory_space<vmem>>, %arg2: memref<8x128xf32, #tpu.memory_space<vmem>>) attributes {dimension_semantics = [#tpu.dimension_semantics<arbitrary>], iteration_bounds = array<i64: 2>, scalar_prefetch = 0 : i64, scratch_operands = 0 : i64, tpu.core_type = #tpu.core_type<tc>, window_params = [{pipeline_mode = #tpu.pipeline_mode<synchronous>, transform_indices = @transform_0, window_bounds = array<i64: 8, 128>}, {transform_indices = @transform_1, window_bounds = array<i64: 8, 128>}]} {
    %c0 = arith.constant 0 : index
    %c0_0 = arith.constant 0 : index
    %0 = vector.load %arg1[%c0, %c0_0] : memref<8x128xf32, #tpu.memory_space<vmem>>, vector<8x128xf32>
    %c0_1 = arith.constant 0 : index
    %c0_2 = arith.constant 0 : index
    %1 = vector.load %arg2[%c0_1, %c0_2] : memref<8x128xf32, #tpu.memory_space<vmem>>, vector<8x128xf32>
    tpu.vector_store %arg2[%c0_1, %c0_2], %0 {strides = array<i32>} : memref<8x128xf32, #tpu.memory_space<vmem>>, vector<8x128xf32>,
    return
  }
  func.func @transform_0(%arg0: i32) -> (i32, i32) {
    %c0_i32 = arith.constant 0 : i32
    %c0_i32_0 = arith.constant 0 : i32
    %c0_i32_1 = arith.constant 0 : i32
    return %c0_i32, %c0_i32_0 : i32, i32
  }
  func.func @transform_1(%arg0: i32) -> (i32, i32) {
    %c0_i32 = arith.constant 0 : i32
    %c0_i32_0 = arith.constant 0 : i32
    return %arg0, %c0_i32 : i32, i32
  }
}

module attributes {stable_mosaic.version = 11 : i64} {
  func.func @layernorm_kernel(%arg0: i32, %arg1: memref<16x32xf32, #tpu.memory_space<vmem>>, %arg2: memref<1x32xf32, #tpu.memory_space<vmem>>, %arg3: memref<1x32xf32, #tpu.memory_space<vmem>>, %arg4: memref<16x32xf32, #tpu.memory_space<vmem>>) attributes {dimension_semantics = [#tpu.dimension_semantics<parallel>], iteration_bounds = array<i64: 1>, scalar_prefetch = 0 : i64, scratch_operands = 0 : i64, tpu.core_type = #tpu.core_type<tc>, window_params = [{transform_indices = @transform_0, window_bounds = array<i64: 16, 32>}, {pipeline_mode = #tpu.pipeline_mode<synchronous>, transform_indices = @transform_1, window_bounds = array<i64: 1, 32>}, {pipeline_mode = #tpu.pipeline_mode<synchronous>, transform_indices = @transform_2, window_bounds = array<i64: 1, 32>}, {transform_indices = @transform_3, window_bounds = array<i64: 16, 32>}]} {
    %c0 = arith.constant 0 : index
    %c0_0 = arith.constant 0 : index
    %0 = vector.load %arg1[%c0, %c0_0] : memref<16x32xf32, #tpu.memory_space<vmem>>, vector<16x32xf32>
    %c0_1 = arith.constant 0 : index
    %c0_2 = arith.constant 0 : index
    %1 = vector.load %arg2[%c0_1, %c0_2] : memref<1x32xf32, #tpu.memory_space<vmem>>, vector<1x32xf32>
    %c0_3 = arith.constant 0 : index
    %c0_4 = arith.constant 0 : index
    %2 = vector.load %arg3[%c0_3, %c0_4] : memref<1x32xf32, #tpu.memory_space<vmem>>, vector<1x32xf32>
    %cst = arith.constant dense<0.000000e+00> : vector<16xf32>
    %3 = vector.multi_reduction <add>, %0, %cst [1] : vector<16x32xf32> to vector<16xf32>
    %4 = vector.shape_cast %3 : vector<16xf32> to vector<16x1xf32>
    %cst_5 = arith.constant 3.200000e+01 : f32
    %5 = vector.broadcast %cst_5 : f32 to vector<16x1xf32>
    %6 = arith.divf %4, %5 : vector<16x1xf32>
    %7 = vector.broadcast %6 : vector<16x1xf32> to vector<16x32xf32>
    %8 = arith.subf %0, %7 : vector<16x32xf32>
    %9 = arith.mulf %8, %8 : vector<16x32xf32>
    %cst_6 = arith.constant dense<0.000000e+00> : vector<16xf32>
    %10 = vector.multi_reduction <add>, %9, %cst_6 [1] : vector<16x32xf32> to vector<16xf32>
    %11 = vector.shape_cast %10 : vector<16xf32> to vector<16x1xf32>
    %cst_7 = arith.constant 3.200000e+01 : f32
    %12 = vector.broadcast %cst_7 : f32 to vector<16x1xf32>
    %13 = arith.divf %11, %12 : vector<16x1xf32>
    %14 = vector.broadcast %6 : vector<16x1xf32> to vector<16x32xf32>
    %15 = arith.subf %0, %14 : vector<16x32xf32>
    %cst_8 = arith.constant 9.99999996E-13 : f32
    %16 = vector.broadcast %cst_8 : f32 to vector<16x1xf32>
    %17 = arith.addf %13, %16 : vector<16x1xf32>
    %18 = math.rsqrt %17 : vector<16x1xf32>
    %19 = vector.broadcast %18 : vector<16x1xf32> to vector<16x32xf32>
    %20 = arith.mulf %15, %19 : vector<16x32xf32>
    %21 = vector.broadcast %1 : vector<1x32xf32> to vector<16x32xf32>
    %22 = arith.mulf %20, %21 : vector<16x32xf32>
    %23 = vector.broadcast %2 : vector<1x32xf32> to vector<16x32xf32>
    %24 = arith.addf %22, %23 : vector<16x32xf32>
    %c0_9 = arith.constant 0 : index
    %c0_10 = arith.constant 0 : index
    %25 = vector.load %arg4[%c0_9, %c0_10] : memref<16x32xf32, #tpu.memory_space<vmem>>, vector<16x32xf32>
    tpu.vector_store %arg4[%c0_9, %c0_10], %24 {strides = array<i32>} : memref<16x32xf32, #tpu.memory_space<vmem>>, vector<16x32xf32>,
    return
  }
  func.func @transform_0(%arg0: i32) -> (i32, i32) {
    %c0_i32 = arith.constant 0 : i32
    %c0_i32_0 = arith.constant 0 : i32
    return %arg0, %c0_i32 : i32, i32
  }
  func.func @transform_1(%arg0: i32) -> (i32, i32) {
    %c0_i32 = arith.constant 0 : i32
    %c0_i32_0 = arith.constant 0 : i32
    %c0_i32_1 = arith.constant 0 : i32
    return %c0_i32, %c0_i32_0 : i32, i32
  }
  func.func @transform_2(%arg0: i32) -> (i32, i32) {
    %c0_i32 = arith.constant 0 : i32
    %c0_i32_0 = arith.constant 0 : i32
    %c0_i32_1 = arith.constant 0 : i32
    return %c0_i32, %c0_i32_0 : i32, i32
  }
  func.func @transform_3(%arg0: i32) -> (i32, i32) {
    %c0_i32 = arith.constant 0 : i32
    %c0_i32_0 = arith.constant 0 : i32
    return %arg0, %c0_i32 : i32, i32
  }
}

</mosaic_0001>

<llo_original>
// kernel: tpu_custom_call.1
$region0: #{tpu_custom_call.1}
  #allocation0 [shape = 'u32[]', space=smem, size = 0x4, offset = 0x4, fixed_abs, tag = 'smem constant byte address 0x4 - core index']
  #allocation1 [shape = 'u32[144,128]{1,0:T(1,128)}', space=vmem, size = 0x12000, scoped, tag = 'internal scratch']
  %s0 = inlined_call_operand.hbm [shape: f32[8,128], index: 0, kind: input, shape index: {}]
  %s1 = inlined_call_operand.hbm [shape: f32[16,128], index: 1, kind: output, shape index: {}]
  %s2 = sld [smem:[#allocation0]]
  $region41: #{tpu_custom_call.1} parent=0
    _
  %s4 = ssub.s32 1, %s2
  %s5 = scalar_select 0, %s4, %s2
  $region1: #{tpu_custom_call.1} parent=0
    #allocation2 [shape = 'u8[4096]{0}', space=vmem, size = 0x1000, scoped, tag = 'input window, operand 0, single buffered']
    #allocation3 [shape = 's32[2]{0}', space=sflag, size = 0x8, scoped, tag = 'scoped memory for tpu_custom_call.1']
    #allocation4 [shape = 's32[2]{0}', space=sflag, size = 0x8, scoped, tag = 'scoped memory for tpu_custom_call.1']
    #allocation5 [shape = 'u8[8192]{0}', space=vmem, size = 0x2000, scoped, tag = 'output window, operand 0']
    %6 = vsyncpa [#allocation3], 0
    %7 = vsyncpa [#allocation4], 0
    %s8 = scalar_lea.sflag [#allocation4], 1
    %9 = vsyncpa %s8, 0
    loop: start=0, step=1, limit=4
    $region2: #{tpu_custom_call.1} parent=1 // loop_pre_header
      _
    $region3: #{tpu_custom_call.1} parent=1 // loop_header
      %s11 = sphi 0, %s15
      %p12 = scmp.ge.s32.totalorder %s11, 4
      %s19 = sphi 0, %s19
      %s21 = sphi 0, %s19
      %s22 = sphi 0, %s21
      %s36 = sphi 0, %s22
      %s42 = sphi 0, %s44
      %s45 = sphi 0, %s42
      %s46 = sphi 0, %s45
      %s62 = sphi 0, %s46
    $region4: #{tpu_custom_call.1} parent=1 // loop_header_branch
      %14 = sbr.rel (%p12) target = $region8
    $region5: #{tpu_custom_call.1} parent=1 // loop_body
      %s16 = ssub.s32 %s11, 1
      %s17 = ssub.s32 %s11, 2
      %s18 = sadd.s32 %s11, 1
      %s20 = sadd.s32 %s19, 1
      %p23 = scmp.eq.s32.totalorder %s11, 1
      %p24 = scmp.ne.s32.totalorder %s19, %s21
      %p25 = scmp.eq.s32.totalorder %s11, 0
      %p26 = por %p24, %p25
      %p27 = scmp.ne.s32.totalorder %s19, %s21
      %p28 = scmp.eq.s32.totalorder %s16, 1
      %p29 = por %p27, %p28
      %p30 = scmp.ne.s32.totalorder %s21, %s22
      %p31 = scmp.eq.s32.totalorder %s16, 0
      %p32 = por %p30, %p31
      %p33 = scmp.ne.s32.totalorder %s21, %s22
      %p34 = scmp.eq.s32.totalorder %s17, 1
      %p35 = por %p33, %p34
      %p37 = scmp.ne.s32.totalorder %s22, %s36
      %p38 = scmp.eq.s32.totalorder %s17, 0
      %p39 = por %p37, %p38
      %s40 = ssub.s32 %s11, %s18
      %p41 = scmp.eq.s32.totalorder %s40, 0
      %s43 = sadd.s32 %s42, 1
      %s44 = scalar_select %p41, %s42, %s43
      %p47 = pneg %p41
      %p48 = scmp.eq.s32.totalorder %s11, 1
      %p49 = por %p47, %p48
      %p50 = scmp.ne.s32.totalorder %s42, %s45
      %p51 = scmp.eq.s32.totalorder %s11, 0
      %p52 = por %p50, %p51
      %p53 = scmp.ne.s32.totalorder %s42, %s45
      %p54 = scmp.eq.s32.totalorder %s16, 1
      %p55 = por %p53, %p54
      %p56 = scmp.ne.s32.totalorder %s45, %s46
      %p57 = scmp.eq.s32.totalorder %s16, 0
      %p58 = por %p56, %p57
      %p59 = scmp.ne.s32.totalorder %s45, %s46
      %p60 = scmp.eq.s32.totalorder %s17, 1
      %p61 = por %p59, %p60
      %p63 = scmp.ne.s32.totalorder %s46, %s62
      %p64 = scmp.eq.s32.totalorder %s17, 0
      %p65 = por %p63, %p64
      %p66 = scmp.le.s32.totalorder 1, %s11
      %p67 = scmp.lt.s32.totalorder %s11, 3
      %p68 = pnand %p66, %p67
      %p69 = pneg %p68
      // Predicated region
      $region9: #{tpu_custom_call.1} parent=5 // pred_check
        _
      $region10: #{tpu_custom_call.1} parent=5 // pred_check_branch
        %71 = sbr.rel (%p68) target = $region12
      $region11: #{tpu_custom_call.1} parent=5 // pred_region
        %s72 = ssub.s32 %s11, 1
        // Predicated region
        $region13: #{tpu_custom_call.1} parent=11 // pred_check
          %p73 = pneg %p32
        $region14: #{tpu_custom_call.1} parent=11 // pred_check_branch
          %75 = sbr.rel (%p73) target = $region16
        $region15: #{tpu_custom_call.1} parent=11 // pred_region
          %s77 = ssub.s32 128, 128
          %78 = vsyncadd [#allocation3], %s77
          %s80 = sshll.u32 [#allocation2], 4
          %s81 = int_to_ptr.vmem [resolvable:$true] %s80
          %83 = dma.hbm_to_vmem [thread:$0]  %s0, 128, %s81, [#allocation3]
        $region16: #{tpu_custom_call.1} parent=11 // pred_fallthru
          _
      $region12: #{tpu_custom_call.1} parent=5 // pred_fallthru
        _
      %p84 = scmp.lt.s32.totalorder %s11, 2
      // Predicated region
      $region17: #{tpu_custom_call.1} parent=5 // pred_check
        %p85 = pneg %p84
      $region18: #{tpu_custom_call.1} parent=5 // pred_check_branch
        %87 = sbr.rel (%p85) target = $region20
      $region19: #{tpu_custom_call.1} parent=5 // pred_region
        _
      $region20: #{tpu_custom_call.1} parent=5 // pred_fallthru
        _
      %p88 = scmp.le.s32.totalorder 1, %s11
      %p89 = scmp.lt.s32.totalorder %s11, 3
      %p90 = pnand %p88, %p89
      %p91 = pneg %p90
      // Predicated region
      $region21: #{tpu_custom_call.1} parent=5 // pred_check
        _
      $region22: #{tpu_custom_call.1} parent=5 // pred_check_branch
        %93 = sbr.rel (%p90) target = $region24
      $region23: #{tpu_custom_call.1} parent=5 // pred_region
        %s94 = ssub.s32 %s11, 1
        // Predicated region
        $region25: #{tpu_custom_call.1} parent=23 // pred_check
          %p95 = pneg %p32
        $region26: #{tpu_custom_call.1} parent=23 // pred_check_branch
          %97 = sbr.rel (%p95) target = $region28
        $region27: #{tpu_custom_call.1} parent=23 // pred_region
          %98 = dma.done [#allocation3], 128
        $region28: #{tpu_custom_call.1} parent=23 // pred_fallthru
          _
        %p99 = pneg %p32
        %p100 = pneg %p29
        %p101 = pneg %p58
        %p102 = pneg %p55
        %s103 = sand.u32 %s45, 1
        %s104 = scalar_lea.sflag [#allocation4], %s103
        %s105 = sand.u32 %s45, 1
        %s106 = smul.addr %s105, 8
        %s107 = scalar_lea.vmem [#allocation5], %s106
        %v108 = vld [vmem:[#allocation2] sm:$0xff]
        %109 = vst [vmem:[%s107] sm:$0xff] %v108
        %s110 = sand.u32 %s45, 1
        %s111 = scalar_lea.sflag [#allocation4], %s110
        %s112 = sand.u32 %s45, 1
        %s113 = smul.addr %s112, 8
        %s114 = scalar_lea.vmem [#allocation5], %s113
        // Predicated region
        $region29: #{tpu_custom_call.1} parent=23 // pred_check
          %p115 = pneg %p55
        $region30: #{tpu_custom_call.1} parent=23 // pred_check_branch
          %117 = sbr.rel (%p115) target = $region32
        $region31: #{tpu_custom_call.1} parent=23 // pred_region
          %s119 = ssub.s32 128, 128
          %120 = vsyncadd %s111, %s119
          %s121 = smul.addr %s16, 128
          %s122 = scalar_lea.hbm %s1, %s121
          %s124 = sshll.u32 %s114, 4
          %s125 = int_to_ptr.vmem [resolvable:$true] %s124
          %127 = dma.vmem_to_hbm [thread:$0]  %s125, 128, %s122, %s111
        $region32: #{tpu_custom_call.1} parent=23 // pred_fallthru
          _
      $region24: #{tpu_custom_call.1} parent=5 // pred_fallthru
        _
      %p128 = scmp.le.s32.totalorder 2, %s11
      // Predicated region
      $region33: #{tpu_custom_call.1} parent=5 // pred_check
        %p129 = pneg %p128
      $region34: #{tpu_custom_call.1} parent=5 // pred_check_branch
        %131 = sbr.rel (%p129) target = $region36
      $region35: #{tpu_custom_call.1} parent=5 // pred_region
        %s132 = ssub.s32 %s11, 2
        // Predicated region
        $region37: #{tpu_custom_call.1} parent=35 // pred_check
          %p133 = pneg %p61
        $region38: #{tpu_custom_call.1} parent=35 // pred_check_branch
          %135 = sbr.rel (%p133) target = $region40
        $region39: #{tpu_custom_call.1} parent=35 // pred_region
          %s136 = sand.u32 %s46, 1
          %s137 = scalar_lea.sflag [#allocation4], %s136
          %s138 = sand.u32 %s46, 1
          %s139 = smul.addr %s138, 8
          %s140 = scalar_lea.vmem [#allocation5], %s139
          %141 = dma.done %s137, 128
        $region40: #{tpu_custom_call.1} parent=35 // pred_fallthru
          _
      $region36: #{tpu_custom_call.1} parent=5 // pred_fallthru
        _
    $region6: #{tpu_custom_call.1} parent=1 // loop_footer
      %s15 = sadd.s32 1, %s11
    $region7: #{tpu_custom_call.1} parent=1 // loop_footer_branch
      %10 = sbr.rel target = $region3
    $region8: #{tpu_custom_call.1} parent=1 // loop_exit
      _
    %142 = vsyncpa [#allocation3], 1
    %s143 = scalar_lea.sflag [#allocation3], 1
    %144 = vsyncpa %s143, 1
    %145 = vsyncpa [#allocation4], 1
    %s146 = scalar_lea.sflag [#allocation4], 1
    %147 = vsyncpa %s146, 1

// kernel: tpu_custom_call.1
$region0: #{tpu_custom_call.1}
  #allocation0 [shape = 'u32[]', space=smem, size = 0x4, offset = 0x4, fixed_abs, tag = 'smem constant byte address 0x4 - core index']
  #allocation1 [shape = 'u32[144,128]{1,0:T(1,128)}', space=vmem, size = 0x12000, scoped, tag = 'internal scratch']
  %s0 = inlined_call_operand.hbm [shape: f32[16,32], index: 0, kind: input, shape index: {}]
  %s1 = inlined_call_operand.vmem [shape: f32[1,32], index: 1, kind: input, shape index: {}]
  %s2 = inlined_call_operand.vmem [shape: f32[1,32], index: 2, kind: input, shape index: {}]
  %s3 = inlined_call_operand.hbm [shape: f32[16,32], index: 3, kind: output, shape index: {}]
  %s4 = sld [smem:[#allocation0]]
  $region26: #{tpu_custom_call.1} parent=0
    _
  %s6 = ssub.s32 1, %s4
  %s7 = scalar_select 0, %s6, %s4
  $region1: #{tpu_custom_call.1} parent=0
    #allocation2 [shape = 'u8[8192]{0}', space=vmem, size = 0x2000, scoped, tag = 'input window, operand 0, single buffered']
    #allocation3 [shape = 's32[1]{0}', space=sflag, size = 0x4, scoped, tag = 'scoped memory for tpu_custom_call.1']
    #allocation4 [shape = 's32[1]{0}', space=sflag, size = 0x4, scoped, tag = 'scoped memory for tpu_custom_call.1']
    #allocation5 [shape = 'u8[8192]{0}', space=vmem, size = 0x2000, scoped, tag = 'output window, operand 0, single buffered']
    %8 = vsyncpa [#allocation3], 0
    %9 = vsyncpa [#allocation4], 0
    // Predicated region
    $region2: #{tpu_custom_call.1} parent=1 // pred_check
      _
    $region3: #{tpu_custom_call.1} parent=1 // pred_check_branch
      %11 = sbr.rel (0) target = $region5
    $region4: #{tpu_custom_call.1} parent=1 // pred_region
      %s13 = ssub.s32 256, 256
      %14 = vsyncadd [#allocation3], %s13
      %s15 = sshll.u32 [#allocation2], 4
      %s16 = int_to_ptr.vmem [resolvable:$true] %s15
      %21 = dma.hbm_to_vmem [thread:$0]  %s0, 256, %s16, [#allocation3], 128, 128, 8
    $region5: #{tpu_custom_call.1} parent=1 // pred_fallthru
      _
    // Predicated region
    $region6: #{tpu_custom_call.1} parent=1 // pred_check
      _
    $region7: #{tpu_custom_call.1} parent=1 // pred_check_branch
      %23 = sbr.rel (0) target = $region9
    $region8: #{tpu_custom_call.1} parent=1 // pred_region
      _
    $region9: #{tpu_custom_call.1} parent=1 // pred_fallthru
      _
    // Predicated region
    $region10: #{tpu_custom_call.1} parent=1 // pred_check
      _
    $region11: #{tpu_custom_call.1} parent=1 // pred_check_branch
      %25 = sbr.rel (0) target = $region13
    $region12: #{tpu_custom_call.1} parent=1 // pred_region
      _
    $region13: #{tpu_custom_call.1} parent=1 // pred_fallthru
      _
    // Predicated region
    $region14: #{tpu_custom_call.1} parent=1 // pred_check
      _
    $region15: #{tpu_custom_call.1} parent=1 // pred_check_branch
      %27 = sbr.rel (0) target = $region17
    $region16: #{tpu_custom_call.1} parent=1 // pred_region
      %28 = dma.done [#allocation3], 256
    $region17: #{tpu_custom_call.1} parent=1 // pred_fallthru
      _
    %v29 = vld [vmem:[#allocation2] sm:$0xff]
    %v30 = vld [vmem:[#allocation2 + $0x8] sm:$0xff]
    %v31 = vld [vmem:[%s1] sm:$0x1]
    %v32 = vld [vmem:[%s2] sm:$0x1]
    %vm33 = vcmask 261120
    %v34 = vsel %vm33, %v29, 0.0
    %35 = vadd.xlane.f32.xlu0 %v34
    %v36 = vpop.xlane.xlu0 %35
    %v37 = vsel %vm33, %v30, 0.0
    %38 = vadd.xlane.f32.xlu0 %v37
    %v39 = vpop.xlane.xlu0 %38
    %v40 = vrcp.pop 32.0
    %v41 = vmul.f32 %v36, %v40
    %v42 = vmul.f32 %v39, %v40
    %v43 = vsub.f32 %v29, %v41
    %v44 = vsub.f32 %v30, %v42
    %v45 = vmul.f32 %v43, %v43
    %v46 = vmul.f32 %v44, %v44
    %v47 = vsel %vm33, %v45, 0.0
    %48 = vadd.xlane.f32.xlu0 %v47
    %v49 = vpop.xlane.xlu0 %48
    %v50 = vsel %vm33, %v46, 0.0
    %51 = vadd.xlane.f32.xlu0 %v50
    %v52 = vpop.xlane.xlu0 %51
    %v53 = vmul.f32 %v49, %v40
    %v54 = vmul.f32 %v52, %v40
    %v55 = vadd.f32 %v53, 1e-12
    %v56 = vadd.f32 %v54, 1e-12
    %v57 = vrsqrt.pop %v55
    %v58 = vrsqrt.pop %v56
    %v59 = vmul.f32 %v43, %v57
    %v60 = vmul.f32 %v44, %v58
    %v62 = vlaneseq
    %v63 = vshrl.u32 %v62, 7
    %v64 = vsub.s32 0, %v63
    %v65 = vrot.slane %v31, %v64
    %v67 = vmul.f32 %v59, %v65
    %v68 = vmul.f32 %v60, %v65
    %v70 = vlaneseq
    %v71 = vshrl.u32 %v70, 7
    %v72 = vsub.s32 0, %v71
    %v73 = vrot.slane %v32, %v72
    %v75 = vadd.f32 %v67, %v73
    %v76 = vadd.f32 %v68, %v73
    %77 = vst.msk [vmem:[#allocation5] sm:$0xff] %vm33, %v75
    %78 = vst.msk [vmem:[#allocation5 + $0x8] sm:$0xff] %vm33, %v76
    // Predicated region
    $region18: #{tpu_custom_call.1} parent=1 // pred_check
      _
    $region19: #{tpu_custom_call.1} parent=1 // pred_check_branch
      %80 = sbr.rel (0) target = $region21
    $region20: #{tpu_custom_call.1} parent=1 // pred_region
      %s82 = ssub.s32 256, 256
      %83 = vsyncadd [#allocation4], %s82
      %s84 = sshll.u32 [#allocation5], 4
      %s85 = int_to_ptr.vmem [resolvable:$true] %s84
      %90 = dma.vmem_to_hbm [thread:$0]  %s85, 256, %s3, [#allocation4], 128, 128, 8
    $region21: #{tpu_custom_call.1} parent=1 // pred_fallthru
      _
    // Predicated region
    $region22: #{tpu_custom_call.1} parent=1 // pred_check
      _
    $region23: #{tpu_custom_call.1} parent=1 // pred_check_branch
      %92 = sbr.rel (0) target = $region25
    $region24: #{tpu_custom_call.1} parent=1 // pred_region
      %93 = dma.done [#allocation4], 256
    $region25: #{tpu_custom_call.1} parent=1 // pred_fallthru
      _
    %94 = vsyncpa [#allocation3], 1
    %95 = vsyncpa [#allocation4], 1

</llo_original>
